<compile_context>
chip_gen: v7x
topology: tpu7x:2x2x1
jax: 0.10.0
libtpu: 0.0.40
codegen_flags: <defaults>
</compile_context>

<pallas_src>
import functools

import numpy as np

import jax
import jax.numpy as jnp
from jax.experimental import pallas as pl
from jax.experimental.pallas import tpu as pltpu


def _round_up(n, m):
    return (n + m - 1) // m * m


def _cdiv(a, b):
    return (a + b - 1) // b


def _device_vmem_capacity():
    try:
        return int(getattr(pltpu.get_tpu_info(), "vmem_capacity_bytes", 64 << 20))
    except Exception:
        return 64 << 20  # conservative fallback (v7x per-TC VMEM)


# --------------------------------------------------------------------------
# Kernels
# --------------------------------------------------------------------------

def _mlp_resident_kernel(x_ref, w1_ref, b1_ref, w2_ref, b2_ref, o_ref):
    # fc1: (tm, in_pad) @ (in_pad, h_pad), f32 accumulation on the MXU.
    h = jnp.dot(x_ref[...], w1_ref[...], preferred_element_type=jnp.float32)
    h = jnp.maximum(h + b1_ref[...], 0.0)          # bias + ReLU (nnf.relu)
    # dropout(p=0.0) is identity.
    out = jnp.dot(h.astype(w2_ref.dtype), w2_ref[...],
                  preferred_element_type=jnp.float32)
    o_ref[...] = (out + b2_ref[...]).astype(o_ref.dtype)
    # dropout(p=0.0) is identity.


def _mlp_chunked_kernel(x_ref, w1_ref, b1_ref, w2_ref, b2_ref, o_ref, acc_ref):
    k = pl.program_id(1)

    @pl.when(k == 0)
    def _():
        # Seed the accumulator with the fc2 bias (saves an epilogue add).
        acc_ref[...] = jnp.zeros_like(acc_ref) + b2_ref[...]

    # fc1 chunk: (tm, in_pad) @ (in_pad, th) -> (tm, th), f32 accumulate on MXU.
    h = jnp.dot(x_ref[...], w1_ref[...], preferred_element_type=jnp.float32)
    h = jnp.maximum(h + b1_ref[...], 0.0)
    # fc2 partial contraction over this hidden chunk, accumulated in f32.
    acc_ref[...] += jnp.dot(h.astype(w2_ref.dtype), w2_ref[...],
                            preferred_element_type=jnp.float32)

    @pl.when(k == pl.num_programs(1) - 1)
    def _():
        o_ref[...] = acc_ref[...].astype(o_ref.dtype)


# --------------------------------------------------------------------------
# pallas_call wrappers (jitted, static tile config)
# --------------------------------------------------------------------------

@functools.partial(jax.jit, static_argnames=("tm", "vmem_limit", "out_dtype"))
def _run_resident(xp, w1p, b1p, w2p, b2p, *, tm, vmem_limit, out_dtype):
    M_pad, in_pad = xp.shape
    h_pad = w1p.shape[1]
    out_pad = w2p.shape[1]
    grid = (M_pad // tm,)
    csz = xp.dtype.itemsize
    osz = jnp.dtype(out_dtype).itemsize
    flops = 2 * M_pad * (in_pad * h_pad + h_pad * out_pad)
    bytes_accessed = (M_pad * in_pad * csz
                      + (in_pad * h_pad + h_pad * out_pad) * csz   # weights once
                      + (h_pad + out_pad) * 4
                      + M_pad * out_pad * osz)
    return pl.pallas_call(
        _mlp_resident_kernel,
        out_shape=jax.ShapeDtypeStruct((M_pad, out_pad), out_dtype),
        grid_spec=pltpu.PrefetchScalarGridSpec(
            num_scalar_prefetch=0,
            grid=grid,
            in_specs=[
                pl.BlockSpec((tm, in_pad), lambda i: (i, 0)),       # x row tile
                pl.BlockSpec((in_pad, h_pad), lambda i: (0, 0)),    # w1 resident
                pl.BlockSpec((1, h_pad), lambda i: (0, 0)),         # b1 resident
                pl.BlockSpec((h_pad, out_pad), lambda i: (0, 0)),   # w2 resident
                pl.BlockSpec((1, out_pad), lambda i: (0, 0)),       # b2 resident
            ],
            out_specs=pl.BlockSpec((tm, out_pad), lambda i: (i, 0)),
        ),
        compiler_params=pltpu.CompilerParams(
            dimension_semantics=("parallel",),
            vmem_limit_bytes=vmem_limit),
        cost_estimate=pl.CostEstimate(flops=flops, transcendentals=0,
                                      bytes_accessed=bytes_accessed),
    )(xp, w1p, b1p, w2p, b2p)


@functools.partial(jax.jit, static_argnames=("tm", "th", "vmem_limit", "out_dtype"))
def _run_chunked(xp, w1p, b1p, w2p, b2p, *, tm, th, vmem_limit, out_dtype):
    M_pad, in_pad = xp.shape
    h_pad = w1p.shape[1]
    out_pad = w2p.shape[1]
    grid = (M_pad // tm, h_pad // th)
    csz = xp.dtype.itemsize
    osz = jnp.dtype(out_dtype).itemsize
    flops = 2 * M_pad * (in_pad * h_pad + h_pad * out_pad)
    bytes_accessed = (M_pad * in_pad * csz
                      + grid[0] * (in_pad * h_pad + h_pad * out_pad) * csz
                      + (h_pad + out_pad) * 4
                      + M_pad * out_pad * osz)
    return pl.pallas_call(
        _mlp_chunked_kernel,
        out_shape=jax.ShapeDtypeStruct((M_pad, out_pad), out_dtype),
        grid_spec=pltpu.PrefetchScalarGridSpec(
            num_scalar_prefetch=0,
            grid=grid,
            in_specs=[
                pl.BlockSpec((tm, in_pad), lambda i, k: (i, 0)),    # x row tile
                pl.BlockSpec((in_pad, th), lambda i, k: (0, k)),    # w1 chunk
                pl.BlockSpec((1, th), lambda i, k: (0, k)),         # b1 chunk
                pl.BlockSpec((th, out_pad), lambda i, k: (k, 0)),   # w2 chunk
                pl.BlockSpec((1, out_pad), lambda i, k: (0, 0)),    # b2
                # NOTE: sweep pipeline_mode=pl.Buffered(3) on the weight specs
                # if profiling shows exposed weight DMA (don't hardcode).
            ],
            out_specs=pl.BlockSpec((tm, out_pad), lambda i, k: (i, 0)),
            scratch_shapes=[pltpu.VMEM((tm, out_pad), jnp.float32)],
        ),
        compiler_params=pltpu.CompilerParams(
            dimension_semantics=("parallel", "arbitrary"),
            vmem_limit_bytes=vmem_limit),
        cost_estimate=pl.CostEstimate(flops=flops, transcendentals=0,
                                      bytes_accessed=bytes_accessed),
    )(xp, w1p, b1p, w2p, b2p)


# --------------------------------------------------------------------------
# Factory: pads/casts weights once, returns apply(x)
# --------------------------------------------------------------------------

def make_mlp_transformer(w1, b1, w2, b2, *, compute_dtype=jnp.bfloat16,
                         tm_target=None, force_chunked=False, max_th=None):
    """w1: (in_dim, h_dim), w2: (h_dim, out_d) -- already transposed relative to
    PyTorch nn.Linear storage.  compute_dtype is the MXU operand dtype (bf16
    default; f32 accumulation is always kept).  Returns apply(x)->(..., out_d)."""
    in_dim, h_dim = w1.shape
    out_d = w2.shape[-1]
    cdt = jnp.dtype(compute_dtype)
    csz = cdt.itemsize

    vmem_cap = _device_vmem_capacity()
    vmem_budget = int(vmem_cap * 0.82)            # headroom for Mosaic internals
    if tm_target is None:
        tm_target = 1024 if vmem_cap >= (100 << 20) else 512   # v5e/v6e vs v7x

    # Lane-dense padding.  256-aligned contraction/output dims fill the 256-wide
    # v6e/v7x MXU (harmless on v5e).  Zero padding is exact: relu(0)=0 and zero
    # w2 rows/cols contribute nothing; padded rows/cols are sliced off after.
    in_pad = _round_up(in_dim, 256)
    out_pad = _round_up(out_d, 256)
    h_pad = _round_up(h_dim, 128)

    # Pre-pad / pre-cast the weights ONCE (not per forward call).
    w1p = jnp.pad(w1.astype(cdt), ((0, in_pad - in_dim), (0, h_pad - h_dim)))
    w2p = jnp.pad(w2.astype(cdt), ((0, h_pad - h_dim), (0, out_pad - out_d)))
    b1p = jnp.pad(b1.astype(jnp.float32), (0, h_pad - h_dim)).reshape(1, h_pad)
    b2p = jnp.pad(b2.astype(jnp.float32), (0, out_pad - out_d)).reshape(1, out_pad)

    weight_bytes = (in_pad * h_pad + h_pad * out_pad) * csz

    def apply(x):
        assert x.shape[-1] == in_dim, (x.shape, in_dim)
        lead = x.shape[:-1]
        out_dtype = x.dtype
        osz = jnp.dtype(out_dtype).itemsize
        x2d = x.reshape(-1, in_dim)
        M = x2d.shape[0]

        # Balanced row tiles (last tile nearly full); keep >= 2 row tiles when
        # M allows so both v7x TensorCores get a "parallel" step.
        n_tiles = max(_cdiv(M, tm_target), 2 if M >= 16 else 1)
        tm = _round_up(_cdiv(M, n_tiles), 8)

        def resident_cost(tm_):
            return (2 * tm_ * in_pad * csz          # x tile (double buffered)
                    + 2 * weight_bytes              # resident w1+w2 (worst case)
                    + 2 * (h_pad + out_pad) * 4     # biases
                    + 2 * tm_ * out_pad * osz       # out tile
                    + tm_ * h_pad * (4 + csz))      # f32 hidden + cast copy

        def chunked_cost(tm_, th_):
            return (2 * tm_ * in_pad * csz
                    + 2 * in_pad * th_ * csz
                    + 2 * th_ * out_pad * csz
                    + 2 * (th_ + out_pad) * 4
                    + 2 * tm_ * out_pad * osz
                    + tm_ * out_pad * 4              # f32 accumulator scratch
                    + tm_ * th_ * (4 + csz))         # f32 hidden + cast copy

        use_resident = (not force_chunked) and resident_cost(tm) <= vmem_budget
        th = None
        if not use_resident:
            # Shrink th first (never out_pad; tm only as a last resort).
            cands = [c for c in (2048, 1024, 768, 512, 384, 256, 128)
                     if c <= h_pad and h_pad % c == 0
                     and (max_th is None or c <= max_th)]
            if not cands:
                cands = [128]
            th = next((c for c in cands if chunked_cost(tm, c) <= vmem_budget),
                      cands[-1])
            while chunked_cost(tm, th) > vmem_budget and tm > 8:
                tm = max(8, _round_up(tm // 2, 8))

        M_pad = _round_up(M, tm)
        xp = jnp.pad(x2d.astype(cdt), ((0, M_pad - M), (0, in_pad - in_dim)))

        if use_resident:
            est = resident_cost(tm)
            vmem_limit = int(min(vmem_cap - (4 << 20),
                                 max(32 << 20, int(est * 1.25) + (4 << 20))))
            out2d = _run_resident(xp, w1p, b1p, w2p, b2p, tm=tm,
                                  vmem_limit=vmem_limit, out_dtype=out_dtype)
        else:
            est = chunked_cost(tm, th)
            vmem_limit = int(min(vmem_cap - (4 << 20),
                                 max(32 << 20, int(est * 1.25) + (4 << 20))))
            out2d = _run_chunked(xp, w1p, b1p, w2p, b2p, tm=tm, th=th,
                                 vmem_limit=vmem_limit, out_dtype=out_dtype)

        return out2d[:M, :out_d].reshape(*lead, out_d)

    return apply


def init_params(key, in_dim, h_dim, out_d, dtype=jnp.float32):
    """Deterministic synthetic params (PyTorch-style uniform fan-in init)."""
    k1, k2, k3, k4 = jax.random.split(key, 4)
    bound1 = 1.0 / jnp.sqrt(in_dim)
    bound2 = 1.0 / jnp.sqrt(h_dim)
    w1 = jax.random.uniform(k1, (in_dim, h_dim), dtype, -bound1, bound1)
    b1 = jax.random.uniform(k2, (h_dim,), dtype, -bound1, bound1)
    w2 = jax.random.uniform(k3, (h_dim, out_d), dtype, -bound2, bound2)
    b2 = jax.random.uniform(k4, (out_d,), dtype, -bound2, bound2)
    return w1, b1, w2, b2


if __name__ == "__main__":
    batch, seq, in_dim, h_dim = 2, 8, 32, 256
    out_d = in_dim  # module default: out_d = in_dim

    key = jax.random.PRNGKey(0)
    kx, kp = jax.random.split(key)
    x = jax.random.normal(kx, (batch, seq, in_dim), jnp.float32)
    w1, b1, w2, b2 = init_params(kp, in_dim, h_dim, out_d)

    # Float64 numpy reference (same math as the PyTorch forward, dropout p=0.0).
    xn, w1n, b1n, w2n, b2n = (np.asarray(a, np.float64) for a in (x, w1, b1, w2, b2))
    ref = np.maximum(xn @ w1n + b1n, 0.0) @ w2n + b2n

    # 1) Default path: bf16 MXU compute, f32 accumulation, resident weights.
    mlp_bf16 = make_mlp_transformer(w1, b1, w2, b2)
    out_bf16 = jax.block_until_ready(mlp_bf16(x))
    assert out_bf16.shape == (batch, seq, out_d)
    assert np.allclose(np.asarray(out_bf16, np.float64), ref, atol=5e-2, rtol=5e-2)

    # 2) Opt-in f32 compute path: tight check.
    mlp_f32 = make_mlp_transformer(w1, b1, w2, b2, compute_dtype=jnp.float32)
    out_f32 = jax.block_until_ready(mlp_f32(x))
    assert np.allclose(np.asarray(out_f32, np.float64), ref, atol=1e-3, rtol=1e-3)

    # 3) Exercise the hidden-chunk fallback path (f32, two k-steps).
    mlp_chunked = make_mlp_transformer(w1, b1, w2, b2, compute_dtype=jnp.float32,
                                       force_chunked=True, max_th=128)
    out_ck = jax.block_until_ready(mlp_chunked(x))
    assert np.allclose(np.asarray(out_ck, np.float64), ref, atol=1e-3, rtol=1e-3)

    print("KERNEL_OK")
</pallas_src>

<mosaic_0001>
module attributes {stable_mosaic.version = 11 : i64} {
  func.func @_mlp_resident_kernel(%arg0: i32, %arg1: memref<8x256xbf16, #tpu.memory_space<vmem>>, %arg2: memref<256x256xbf16, #tpu.memory_space<vmem>>, %arg3: memref<1x256xf32, #tpu.memory_space<vmem>>, %arg4: memref<256x256xbf16, #tpu.memory_space<vmem>>, %arg5: memref<1x256xf32, #tpu.memory_space<vmem>>, %arg6: memref<8x256xf32, #tpu.memory_space<vmem>>) attributes {dimension_semantics = [#tpu.dimension_semantics<parallel>], iteration_bounds = array<i64: 2>, scalar_prefetch = 0 : i64, scratch_operands = 0 : i64, tpu.core_type = #tpu.core_type<tc>, window_params = [{transform_indices = @transform_0, window_bounds = array<i64: 8, 256>}, {pipeline_mode = #tpu.pipeline_mode<synchronous>, transform_indices = @transform_1, window_bounds = array<i64: 256, 256>}, {pipeline_mode = #tpu.pipeline_mode<synchronous>, transform_indices = @transform_2, window_bounds = array<i64: 1, 256>}, {pipeline_mode = #tpu.pipeline_mode<synchronous>, transform_indices = @transform_3, window_bounds = array<i64: 256, 256>}, {pipeline_mode = #tpu.pipeline_mode<synchronous>, transform_indices = @transform_4, window_bounds = array<i64: 1, 256>}, {transform_indices = @transform_5, window_bounds = array<i64: 8, 256>}]} {
    %c0 = arith.constant 0 : index
    %c0_0 = arith.constant 0 : index
    %0 = vector.load %arg1[%c0, %c0_0] : memref<8x256xbf16, #tpu.memory_space<vmem>>, vector<8x256xbf16>
    %c0_1 = arith.constant 0 : index
    %c0_2 = arith.constant 0 : index
    %1 = vector.load %arg2[%c0_1, %c0_2] : memref<256x256xbf16, #tpu.memory_space<vmem>>, vector<256x256xbf16>
    %cst = arith.constant dense<0.000000e+00> : vector<8x256xf32>
    %2 = tpu.matmul %0, %1, %cst {dimension_numbers = #tpu.dot_dimension_numbers<[1], [0], [0], [1], [0, 0, 1, 1], [], []>} : vector<8x256xbf16>, vector<256x256xbf16>, vector<8x256xf32> -> vector<8x256xf32>
    %c0_3 = arith.constant 0 : index
    %c0_4 = arith.constant 0 : index
    %3 = vector.load %arg3[%c0_3, %c0_4] : memref<1x256xf32, #tpu.memory_space<vmem>>, vector<1x256xf32>
    %4 = vector.broadcast %3 : vector<1x256xf32> to vector<8x256xf32>
    %5 = arith.addf %2, %4 : vector<8x256xf32>
    %cst_5 = arith.constant 0.000000e+00 : f32
    %6 = vector.broadcast %cst_5 : f32 to vector<8x256xf32>
    %7 = arith.maximumf %5, %6 : vector<8x256xf32>
    %8 = arith.truncf %7 : vector<8x256xf32> to vector<8x256xbf16>
    %c0_6 = arith.constant 0 : index
    %c0_7 = arith.constant 0 : index
    %9 = vector.load %arg4[%c0_6, %c0_7] : memref<256x256xbf16, #tpu.memory_space<vmem>>, vector<256x256xbf16>
    %cst_8 = arith.constant dense<0.000000e+00> : vector<8x256xf32>
    %10 = tpu.matmul %8, %9, %cst_8 {dimension_numbers = #tpu.dot_dimension_numbers<[1], [0], [0], [1], [0, 0, 1, 1], [], []>} : vector<8x256xbf16>, vector<256x256xbf16>, vector<8x256xf32> -> vector<8x256xf32>
    %c0_9 = arith.constant 0 : index
    %c0_10 = arith.constant 0 : index
    %11 = vector.load %arg5[%c0_9, %c0_10] : memref<1x256xf32, #tpu.memory_space<vmem>>, vector<1x256xf32>
    %12 = vector.broadcast %11 : vector<1x256xf32> to vector<8x256xf32>
    %13 = arith.addf %10, %12 : vector<8x256xf32>
    %c0_11 = arith.constant 0 : index
    %c0_12 = arith.constant 0 : index
    %14 = vector.load %arg6[%c0_11, %c0_12] : memref<8x256xf32, #tpu.memory_space<vmem>>, vector<8x256xf32>
    tpu.vector_store %arg6[%c0_11, %c0_12], %13 {strides = array<i32>} : memref<8x256xf32, #tpu.memory_space<vmem>>, vector<8x256xf32>,
    return
  }
  func.func @transform_0(%arg0: i32) -> (i32, i32) {
    %c0_i32 = arith.constant 0 : i32
    %c0_i32_0 = arith.constant 0 : i32
    return %arg0, %c0_i32 : i32, i32
  }
  func.func @transform_1(%arg0: i32) -> (i32, i32) {
    %c0_i32 = arith.constant 0 : i32
    %c0_i32_0 = arith.constant 0 : i32
    %c0_i32_1 = arith.constant 0 : i32
    return %c0_i32, %c0_i32_0 : i32, i32
  }
  func.func @transform_2(%arg0: i32) -> (i32, i32) {
    %c0_i32 = arith.constant 0 : i32
    %c0_i32_0 = arith.constant 0 : i32
    %c0_i32_1 = arith.constant 0 : i32
    return %c0_i32, %c0_i32_0 : i32, i32
  }
  func.func @transform_3(%arg0: i32) -> (i32, i32) {
    %c0_i32 = arith.constant 0 : i32
    %c0_i32_0 = arith.constant 0 : i32
    %c0_i32_1 = arith.constant 0 : i32
    return %c0_i32, %c0_i32_0 : i32, i32
  }
  func.func @transform_4(%arg0: i32) -> (i32, i32) {
    %c0_i32 = arith.constant 0 : i32
    %c0_i32_0 = arith.constant 0 : i32
    %c0_i32_1 = arith.constant 0 : i32
    return %c0_i32, %c0_i32_0 : i32, i32
  }
  func.func @transform_5(%arg0: i32) -> (i32, i32) {
    %c0_i32 = arith.constant 0 : i32
    %c0_i32_0 = arith.constant 0 : i32
    return %arg0, %c0_i32 : i32, i32
  }
}

</mosaic_0001>

<llo_original>
// kernel: _run_resident.1
$region0: #{_run_resident.1}
  #allocation0 [shape = 'u32[]', space=smem, size = 0x4, offset = 0x4, fixed_abs, tag = 'smem constant byte address 0x4 - core index']
  #allocation1 [shape = 'u32[144,128]{1,0:T(1,128)}', space=vmem, size = 0x12000, scoped, tag = 'internal scratch']
  %s0 = inlined_call_operand.hbm [shape: bf16[16,256], index: 0, kind: input, shape index: {}]
  %s1 = inlined_call_operand.hbm [shape: bf16[256,256], index: 1, kind: input, shape index: {}]
  %s2 = inlined_call_operand.vmem [shape: f32[1,256], index: 2, kind: input, shape index: {}]
  %s3 = inlined_call_operand.hbm [shape: bf16[256,256], index: 3, kind: input, shape index: {}]
  %s4 = inlined_call_operand.vmem [shape: f32[1,256], index: 4, kind: input, shape index: {}]
  %s5 = inlined_call_operand.hbm [shape: f32[16,256], index: 5, kind: output, shape index: {}]
  %s6 = sld [smem:[#allocation0]]
  $region65: #{_run_resident.1} parent=0
    _
  %s8 = ssub.s32 1, %s6
  %s9 = scalar_select 0, %s8, %s6
  $region1: #{_run_resident.1} parent=0
    #allocation2 [shape = 'u8[8192]{0}', space=vmem, size = 0x2000, scoped, tag = 'input window, operand 0']
    #allocation3 [shape = 's32[2]{0}', space=sflag, size = 0x8, scoped, tag = 'scoped memory for _run_resident.1']
    #allocation4 [shape = 's32[2]{0}', space=sflag, size = 0x8, scoped, tag = 'scoped memory for _run_resident.1']
    #allocation5 [shape = 'u8[131072]{0}', space=vmem, size = 0x20000, scoped, tag = 'input window, operand 1, single buffered']
    #allocation6 [shape = 's32[1]{0}', space=sflag, size = 0x4, scoped, tag = 'scoped memory for _run_resident.1']
    #allocation7 [shape = 'u8[131072]{0}', space=vmem, size = 0x20000, scoped, tag = 'input window, operand 3, single buffered']
    #allocation8 [shape = 'u8[16384]{0}', space=vmem, size = 0x4000, scoped, tag = 'output window, operand 0']
    %10 = vsyncpa [#allocation3], 0
    %s11 = scalar_lea.sflag [#allocation3], 1
    %12 = vsyncpa %s11, 0
    %13 = vsyncpa [#allocation6], 0
    %14 = vsyncpa [#allocation4], 0
    %s15 = scalar_lea.sflag [#allocation4], 1
    %16 = vsyncpa %s15, 0
    loop: start=0, step=1, limit=4
    $region2: #{_run_resident.1} parent=1 // loop_pre_header
      _
    $region3: #{_run_resident.1} parent=1 // loop_header
      %s18 = sphi 0, %s22
      %p19 = scmp.ge.s32.totalorder %s18, 4
      %s28 = sphi 0, %s30
      %s31 = sphi 0, %s28
      %s32 = sphi 0, %s31
      %s48 = sphi 0, %s32
      %s52 = sphi 0, %s52
      %s54 = sphi 0, %s52
      %s55 = sphi 0, %s54
      %s69 = sphi 0, %s55
      %s73 = sphi 0, %s73
      %s75 = sphi 0, %s73
      %s76 = sphi 0, %s75
      %s90 = sphi 0, %s76
      %s94 = sphi 0, %s94
      %s96 = sphi 0, %s94
      %s97 = sphi 0, %s96
      %s111 = sphi 0, %s97
      %s115 = sphi 0, %s115
      %s117 = sphi 0, %s115
      %s118 = sphi 0, %s117
      %s132 = sphi 0, %s118
      %s138 = sphi 0, %s140
      %s141 = sphi 0, %s138
      %s142 = sphi 0, %s141
      %s158 = sphi 0, %s142
    $region4: #{_run_resident.1} parent=1 // loop_header_branch
      %21 = sbr.rel (%p19) target = $region8
    $region5: #{_run_resident.1} parent=1 // loop_body
      %s23 = ssub.s32 %s18, 1
      %s24 = ssub.s32 %s18, 2
      %s25 = sadd.s32 %s18, 1
      %s26 = ssub.s32 %s18, %s25
      %p27 = scmp.eq.s32.totalorder %s26, 0
      %s29 = sadd.s32 %s28, 1
      %s30 = scalar_select %p27, %s28, %s29
      %p33 = pneg %p27
      %p34 = scmp.eq.s32.totalorder %s18, 1
      %p35 = por %p33, %p34
      %p36 = scmp.ne.s32.totalorder %s28, %s31
      %p37 = scmp.eq.s32.totalorder %s18, 0
      %p38 = por %p36, %p37
      %p39 = scmp.ne.s32.totalorder %s28, %s31
      %p40 = scmp.eq.s32.totalorder %s23, 1
      %p41 = por %p39, %p40
      %p42 = scmp.ne.s32.totalorder %s31, %s32
      %p43 = scmp.eq.s32.totalorder %s23, 0
      %p44 = por %p42, %p43
      %p45 = scmp.ne.s32.totalorder %s31, %s32
      %p46 = scmp.eq.s32.totalorder %s24, 1
      %p47 = por %p45, %p46
      %p49 = scmp.ne.s32.totalorder %s32, %s48
      %p50 = scmp.eq.s32.totalorder %s24, 0
      %p51 = por %p49, %p50
      %s53 = sadd.s32 %s52, 1
      %p56 = scmp.eq.s32.totalorder %s18, 1
      %p57 = scmp.ne.s32.totalorder %s52, %s54
      %p58 = scmp.eq.s32.totalorder %s18, 0
      %p59 = por %p57, %p58
      %p60 = scmp.ne.s32.totalorder %s52, %s54
      %p61 = scmp.eq.s32.totalorder %s23, 1
      %p62 = por %p60, %p61
      %p63 = scmp.ne.s32.totalorder %s54, %s55
      %p64 = scmp.eq.s32.totalorder %s23, 0
      %p65 = por %p63, %p64
      %p66 = scmp.ne.s32.totalorder %s54, %s55
      %p67 = scmp.eq.s32.totalorder %s24, 1
      %p68 = por %p66, %p67
      %p70 = scmp.ne.s32.totalorder %s55, %s69
      %p71 = scmp.eq.s32.totalorder %s24, 0
      %p72 = por %p70, %p71
      %s74 = sadd.s32 %s73, 1
      %p77 = scmp.eq.s32.totalorder %s18, 1
      %p78 = scmp.ne.s32.totalorder %s73, %s75
      %p79 = scmp.eq.s32.totalorder %s18, 0
      %p80 = por %p78, %p79
      %p81 = scmp.ne.s32.totalorder %s73, %s75
      %p82 = scmp.eq.s32.totalorder %s23, 1
      %p83 = por %p81, %p82
      %p84 = scmp.ne.s32.totalorder %s75, %s76
      %p85 = scmp.eq.s32.totalorder %s23, 0
      %p86 = por %p84, %p85
      %p87 = scmp.ne.s32.totalorder %s75, %s76
      %p88 = scmp.eq.s32.totalorder %s24, 1
      %p89 = por %p87, %p88
      %p91 = scmp.ne.s32.totalorder %s76, %s90
      %p92 = scmp.eq.s32.totalorder %s24, 0
      %p93 = por %p91, %p92
      %s95 = sadd.s32 %s94, 1
      %p98 = scmp.eq.s32.totalorder %s18, 1
      %p99 = scmp.ne.s32.totalorder %s94, %s96
      %p100 = scmp.eq.s32.totalorder %s18, 0
      %p101 = por %p99, %p100
      %p102 = scmp.ne.s32.totalorder %s94, %s96
      %p103 = scmp.eq.s32.totalorder %s23, 1
      %p104 = por %p102, %p103
      %p105 = scmp.ne.s32.totalorder %s96, %s97
      %p106 = scmp.eq.s32.totalorder %s23, 0
      %p107 = por %p105, %p106
      %p108 = scmp.ne.s32.totalorder %s96, %s97
      %p109 = scmp.eq.s32.totalorder %s24, 1
      %p110 = por %p108, %p109
      %p112 = scmp.ne.s32.totalorder %s97, %s111
      %p113 = scmp.eq.s32.totalorder %s24, 0
      %p114 = por %p112, %p113
      %s116 = sadd.s32 %s115, 1
      %p119 = scmp.eq.s32.totalorder %s18, 1
      %p120 = scmp.ne.s32.totalorder %s115, %s117
      %p121 = scmp.eq.s32.totalorder %s18, 0
      %p122 = por %p120, %p121
      %p123 = scmp.ne.s32.totalorder %s115, %s117
      %p124 = scmp.eq.s32.totalorder %s23, 1
      %p125 = por %p123, %p124
      %p126 = scmp.ne.s32.totalorder %s117, %s118
      %p127 = scmp.eq.s32.totalorder %s23, 0
      %p128 = por %p126, %p127
      %p129 = scmp.ne.s32.totalorder %s117, %s118
      %p130 = scmp.eq.s32.totalorder %s24, 1
      %p131 = por %p129, %p130
      %p133 = scmp.ne.s32.totalorder %s118, %s132
      %p134 = scmp.eq.s32.totalorder %s24, 0
      %p135 = por %p133, %p134
      %s136 = ssub.s32 %s18, %s25
      %p137 = scmp.eq.s32.totalorder %s136, 0
      %s139 = sadd.s32 %s138, 1
      %s140 = scalar_select %p137, %s138, %s139
      %p143 = pneg %p137
      %p144 = scmp.eq.s32.totalorder %s18, 1
      %p145 = por %p143, %p144
      %p146 = scmp.ne.s32.totalorder %s138, %s141
      %p147 = scmp.eq.s32.totalorder %s18, 0
      %p148 = por %p146, %p147
      %p149 = scmp.ne.s32.totalorder %s138, %s141
      %p150 = scmp.eq.s32.totalorder %s23, 1
      %p151 = por %p149, %p150
      %p152 = scmp.ne.s32.totalorder %s141, %s142
      %p153 = scmp.eq.s32.totalorder %s23, 0
      %p154 = por %p152, %p153
      %p155 = scmp.ne.s32.totalorder %s141, %s142
      %p156 = scmp.eq.s32.totalorder %s24, 1
      %p157 = por %p155, %p156
      %p159 = scmp.ne.s32.totalorder %s142, %s158
      %p160 = scmp.eq.s32.totalorder %s24, 0
      %p161 = por %p159, %p160
      %p162 = scmp.le.s32.totalorder 1, %s18
      %p163 = scmp.lt.s32.totalorder %s18, 3
      %p164 = pnand %p162, %p163
      %p165 = pneg %p164
      // Predicated region
      $region9: #{_run_resident.1} parent=5 // pred_check
        _
      $region10: #{_run_resident.1} parent=5 // pred_check_branch
        %167 = sbr.rel (%p164) target = $region12
      $region11: #{_run_resident.1} parent=5 // pred_region
        %s168 = ssub.s32 %s18, 1
        // Predicated region
        $region13: #{_run_resident.1} parent=11 // pred_check
          %p169 = pneg %p65
        $region14: #{_run_resident.1} parent=11 // pred_check_branch
          %171 = sbr.rel (%p169) target = $region16
        $region15: #{_run_resident.1} parent=11 // pred_region
          %s173 = ssub.s32 4096, 4096
          %174 = vsyncadd [#allocation6], %s173
          %s175 = sshll.u32 [#allocation5], 4
          %s176 = int_to_ptr.vmem [resolvable:$true] %s175
          %181 = dma.hbm_to_vmem [thread:$0]  %s1, 4096, %s176, [#allocation6], 128, 128, 8
        $region16: #{_run_resident.1} parent=11 // pred_fallthru
          _
        // Predicated region
        $region17: #{_run_resident.1} parent=11 // pred_check
          %p182 = pneg %p86
        $region18: #{_run_resident.1} parent=11 // pred_check_branch
          %184 = sbr.rel (%p182) target = $region20
        $region19: #{_run_resident.1} parent=11 // pred_region
          _
        $region20: #{_run_resident.1} parent=11 // pred_fallthru
          _
        // Predicated region
        $region21: #{_run_resident.1} parent=11 // pred_check
          %p185 = pneg %p107
        $region22: #{_run_resident.1} parent=11 // pred_check_branch
          %187 = sbr.rel (%p185) target = $region24
        $region23: #{_run_resident.1} parent=11 // pred_region
          %s189 = ssub.s32 4096, 4096
          %190 = vsyncadd [#allocation6], %s189
          %s191 = sshll.u32 [#allocation7], 4
          %s192 = int_to_ptr.vmem [resolvable:$true] %s191
          %197 = dma.hbm_to_vmem [thread:$0]  %s3, 4096, %s192, [#allocation6], 128, 128, 8
        $region24: #{_run_resident.1} parent=11 // pred_fallthru
          _
        // Predicated region
        $region25: #{_run_resident.1} parent=11 // pred_check
          %p198 = pneg %p128
        $region26: #{_run_resident.1} parent=11 // pred_check_branch
          %200 = sbr.rel (%p198) target = $region28
        $region27: #{_run_resident.1} parent=11 // pred_region
          _
        $region28: #{_run_resident.1} parent=11 // pred_fallthru
          _
      $region12: #{_run_resident.1} parent=5 // pred_fallthru
        _
      %p201 = scmp.lt.s32.totalorder %s18, 2
      // Predicated region
      $region29: #{_run_resident.1} parent=5 // pred_check
        %p202 = pneg %p201
      $region30: #{_run_resident.1} parent=5 // pred_check_branch
        %204 = sbr.rel (%p202) target = $region32
      $region31: #{_run_resident.1} parent=5 // pred_region
        // Predicated region
        $region33: #{_run_resident.1} parent=31 // pred_check
          %p205 = pneg %p38
        $region34: #{_run_resident.1} parent=31 // pred_check_branch
          %207 = sbr.rel (%p205) target = $region36
        $region35: #{_run_resident.1} parent=31 // pred_region
          %s208 = sand.u32 %s28, 1
          %s209 = scalar_lea.sflag [#allocation3], %s208
          %s210 = sand.u32 %s28, 1
          %s211 = smul.addr %s210, 8
          %s212 = scalar_lea.vmem [#allocation2], %s211
          %s214 = ssub.s32 128, 128
          %215 = vsyncadd %s209, %s214
          %s216 = smul.addr %s18, 2
          %s217 = smul.addr %s216, 64
          %s218 = scalar_lea.hbm %s0, %s217
          %s220 = sshll.u32 %s212, 4
          %s221 = int_to_ptr.vmem [resolvable:$true] %s220
          %223 = dma.hbm_to_vmem [thread:$0]  %s218, 128, %s221, %s209
        $region36: #{_run_resident.1} parent=31 // pred_fallthru
          _
      $region32: #{_run_resident.1} parent=5 // pred_fallthru
        _
      %p224 = scmp.le.s32.totalorder 1, %s18
      %p225 = scmp.lt.s32.totalorder %s18, 3
      %p226 = pnand %p224, %p225
      %p227 = pneg %p226
      // Predicated region
      $region37: #{_run_resident.1} parent=5 // pred_check
        _
      $region38: #{_run_resident.1} parent=5 // pred_check_branch
        %229 = sbr.rel (%p226) target = $region40
      $region39: #{_run_resident.1} parent=5 // pred_region
        %s230 = ssub.s32 %s18, 1
        %s231 = sand.u32 %s31, 1
        %s232 = scalar_lea.sflag [#allocation3], %s231
        %s233 = sand.u32 %s31, 1
        %s234 = smul.addr %s233, 8
        %s235 = scalar_lea.vmem [#allocation2], %s234
        // Predicated region
        $region41: #{_run_resident.1} parent=39 // pred_check
          %p236 = pneg %p44
        $region42: #{_run_resident.1} parent=39 // pred_check_branch
          %238 = sbr.rel (%p236) target = $region44
        $region43: #{_run_resident.1} parent=39 // pred_region
          %239 = dma.done %s232, 128
        $region44: #{_run_resident.1} parent=39 // pred_fallthru
          _
        // Predicated region
        $region45: #{_run_resident.1} parent=39 // pred_check
          %p240 = pneg %p65
        $region46: #{_run_resident.1} parent=39 // pred_check_branch
          %242 = sbr.rel (%p240) target = $region48
        $region47: #{_run_resident.1} parent=39 // pred_region
          %243 = dma.done [#allocation6], 4096
        $region48: #{_run_resident.1} parent=39 // pred_fallthru
          _
        // Predicated region
        $region49: #{_run_resident.1} parent=39 // pred_check
          %p244 = pneg %p107
        $region50: #{_run_resident.1} parent=39 // pred_check_branch
          %246 = sbr.rel (%p244) target = $region52
        $region51: #{_run_resident.1} parent=39 // pred_region
          %247 = dma.done [#allocation6], 4096
        $region52: #{_run_resident.1} parent=39 // pred_fallthru
          _
        %s248 = sand.u32 %s31, 1
        %s249 = scalar_lea.sflag [#allocation3], %s248
        %s250 = sand.u32 %s31, 1
        %s251 = smul.addr %s250, 8
        %s252 = scalar_lea.vmem [#allocation2], %s251
        %p253 = pneg %p44
        %p254 = pneg %p41
        %p255 = pneg %p65
        %p256 = pneg %p62
        %p257 = pneg %p86
        %p258 = pneg %p83
        %p259 = pneg %p107
        %p260 = pneg %p104
        %p261 = pneg %p128
        %p262 = pneg %p125
        %p263 = pneg %p154
        %p264 = pneg %p151
        %s265 = sand.u32 %s141, 1
        %s266 = scalar_lea.sflag [#allocation4], %s265
        %s267 = sand.u32 %s141, 1
        %s268 = smul.addr %s267, 16
        %s269 = scalar_lea.vmem [#allocation8], %s268
        %v270 = vld [vmem:[%s235] sm:$0xff]
        %v271 = vld [vmem:[#allocation5] sm:$0xff]
        %v272 = vld [vmem:[#allocation5 + $0x8] sm:$0xff]
        %v273 = vld [vmem:[#allocation5 + $0x10] sm:$0xff]
        %v274 = vld [vmem:[#allocation5 + $0x18] sm:$0xff]
        %v275 = vld [vmem:[#allocation5 + $0x20] sm:$0xff]
        %v276 = vld [vmem:[#allocation5 + $0x28] sm:$0xff]
        %v277 = vld [vmem:[#allocation5 + $0x30] sm:$0xff]
        %v278 = vld [vmem:[#allocation5 + $0x38] sm:$0xff]
        %v279 = vld [vmem:[#allocation5 + $0x40] sm:$0xff]
        %v280 = vld [vmem:[#allocation5 + $0x48] sm:$0xff]
        %v281 = vld [vmem:[#allocation5 + $0x50] sm:$0xff]
        %v282 = vld [vmem:[#allocation5 + $0x58] sm:$0xff]
        %v283 = vld [vmem:[#allocation5 + $0x60] sm:$0xff]
        %v284 = vld [vmem:[#allocation5 + $0x68] sm:$0xff]
        %v285 = vld [vmem:[#allocation5 + $0x70] sm:$0xff]
        %v286 = vld [vmem:[#allocation5 + $0x78] sm:$0xff]
        %v287 = vld [vmem:[#allocation5 + $0x80] sm:$0xff]
        %v288 = vld [vmem:[#allocation5 + $0x88] sm:$0xff]
        %v289 = vld [vmem:[#allocation5 + $0x90] sm:$0xff]
        %v290 = vld [vmem:[#allocation5 + $0x98] sm:$0xff]
        %v291 = vld [vmem:[#allocation5 + $0xa0] sm:$0xff]
        %v292 = vld [vmem:[#allocation5 + $0xa8] sm:$0xff]
        %v293 = vld [vmem:[#allocation5 + $0xb0] sm:$0xff]
        %v294 = vld [vmem:[#allocation5 + $0xb8] sm:$0xff]
        %v295 = vld [vmem:[#allocation5 + $0xc0] sm:$0xff]
        %v296 = vld [vmem:[#allocation5 + $0xc8] sm:$0xff]
        %v297 = vld [vmem:[#allocation5 + $0xd0] sm:$0xff]
        %v298 = vld [vmem:[#allocation5 + $0xd8] sm:$0xff]
        %v299 = vld [vmem:[#allocation5 + $0xe0] sm:$0xff]
        %v300 = vld [vmem:[#allocation5 + $0xe8] sm:$0xff]
        %v301 = vld [vmem:[#allocation5 + $0xf0] sm:$0xff]
        %v302 = vld [vmem:[#allocation5 + $0xf8] sm:$0xff]
        %v303 = vld [vmem:[%s2] sm:$0x3]
        %v305 = vlaneseq
        %v306 = vshrl.u32 %v305, 7
        %v307 = vsub.s32 0, %v306
        %v308 = vrot.slane %v303, %v307
        %v309 = vlaneseq
        %v310 = vshrl.u32 %v309, 7
        %v311 = vsub.s32 1, %v310
        %v312 = vrot.slane %v303, %v311
        %v316 = vunpack.c.l.b16 %v270
        %v317 = vunpack.c.h.b16 %v270
        %v318 = vpack.c.b16 %v316, %v316
        %v319 = vpack.c.b16 %v317, %v317
        %v354 = vunpack.c.l.b16 %v271
        %v355 = vunpack.c.h.b16 %v271
        %v356 = vunpack.c.l.b16 %v272
        %v357 = vunpack.c.h.b16 %v272
        %v358 = vunpack.c.l.b16 %v273
        %v359 = vunpack.c.h.b16 %v273
        %v360 = vunpack.c.l.b16 %v274
        %v361 = vunpack.c.h.b16 %v274
        %v362 = vunpack.c.l.b16 %v275
        %v363 = vunpack.c.h.b16 %v275
        %v364 = vunpack.c.l.b16 %v276
        %v365 = vunpack.c.h.b16 %v276
        %v366 = vunpack.c.l.b16 %v277
        %v367 = vunpack.c.h.b16 %v277
        %v368 = vunpack.c.l.b16 %v278
        %v369 = vunpack.c.h.b16 %v278
        %v370 = vunpack.c.l.b16 %v279
        %v371 = vunpack.c.h.b16 %v279
        %v372 = vunpack.c.l.b16 %v280
        %v373 = vunpack.c.h.b16 %v280
        %v374 = vunpack.c.l.b16 %v281
        %v375 = vunpack.c.h.b16 %v281
        %v376 = vunpack.c.l.b16 %v282
        %v377 = vunpack.c.h.b16 %v282
        %v378 = vunpack.c.l.b16 %v283
        %v379 = vunpack.c.h.b16 %v283
        %v380 = vunpack.c.l.b16 %v284
        %v381 = vunpack.c.h.b16 %v284
        %v382 = vunpack.c.l.b16 %v285
        %v383 = vunpack.c.h.b16 %v285
        %v384 = vunpack.c.l.b16 %v286
        %v385 = vunpack.c.h.b16 %v286
        %v386 = vunpack.c.l.b16 %v287
        %v387 = vunpack.c.h.b16 %v287
        %v388 = vunpack.c.l.b16 %v288
        %v389 = vunpack.c.h.b16 %v288
        %v390 = vunpack.c.l.b16 %v289
        %v391 = vunpack.c.h.b16 %v289
        %v392 = vunpack.c.l.b16 %v290
        %v393 = vunpack.c.h.b16 %v290
        %v394 = vunpack.c.l.b16 %v291
        %v395 = vunpack.c.h.b16 %v291
        %v396 = vunpack.c.l.b16 %v292
        %v397 = vunpack.c.h.b16 %v292
        %v398 = vunpack.c.l.b16 %v293
        %v399 = vunpack.c.h.b16 %v293
        %v400 = vunpack.c.l.b16 %v294
        %v401 = vunpack.c.h.b16 %v294
        %v402 = vunpack.c.l.b16 %v295
        %v403 = vunpack.c.h.b16 %v295
        %v404 = vunpack.c.l.b16 %v296
        %v405 = vunpack.c.h.b16 %v296
        %v406 = vunpack.c.l.b16 %v297
        %v407 = vunpack.c.h.b16 %v297
        %v408 = vunpack.c.l.b16 %v298
        %v409 = vunpack.c.h.b16 %v298
        %v410 = vunpack.c.l.b16 %v299
        %v411 = vunpack.c.h.b16 %v299
        %v412 = vunpack.c.l.b16 %v300
        %v413 = vunpack.c.h.b16 %v300
        %v414 = vunpack.c.l.b16 %v301
        %v415 = vunpack.c.h.b16 %v301
        %v416 = vunpack.c.l.b16 %v302
        %v417 = vunpack.c.h.b16 %v302
        %v418 = vpack.c.b16 %v356, %v354
        %v419 = vpack.c.b16 %v357, %v355
        %v420 = vpack.c.b16 %v360, %v358
        %v421 = vpack.c.b16 %v361, %v359
        %v422 = vpack.c.b16 %v364, %v362
        %v423 = vpack.c.b16 %v365, %v363
        %v424 = vpack.c.b16 %v368, %v366
        %v425 = vpack.c.b16 %v369, %v367
        %v426 = vpack.c.b16 %v372, %v370
        %v427 = vpack.c.b16 %v373, %v371
        %v428 = vpack.c.b16 %v376, %v374
        %v429 = vpack.c.b16 %v377, %v375
        %v430 = vpack.c.b16 %v380, %v378
        %v431 = vpack.c.b16 %v381, %v379
        %v432 = vpack.c.b16 %v384, %v382
        %v433 = vpack.c.b16 %v385, %v383
        %v434 = vpack.c.b16 %v388, %v386
        %v435 = vpack.c.b16 %v389, %v387
        %v436 = vpack.c.b16 %v392, %v390
        %v437 = vpack.c.b16 %v393, %v391
        %v438 = vpack.c.b16 %v396, %v394
        %v439 = vpack.c.b16 %v397, %v395
        %v440 = vpack.c.b16 %v400, %v398
        %v441 = vpack.c.b16 %v401, %v399
        %v442 = vpack.c.b16 %v404, %v402
        %v443 = vpack.c.b16 %v405, %v403
        %v444 = vpack.c.b16 %v408, %v406
        %v445 = vpack.c.b16 %v409, %v407
        %v446 = vpack.c.b16 %v412, %v410
        %v447 = vpack.c.b16 %v413, %v411
        %v448 = vpack.c.b16 %v416, %v414
        %v449 = vpack.c.b16 %v417, %v415
        %482 = vmatprep.subr.bf16.mxu0 %v419
        %483 = vmatpush1.bf16.msra.mxu0 %v418
        %484 = vmatprep.subr.bf16.mxu0 %v421
        %485 = vmatpush1.bf16.msra.mxu0 %v420
        %486 = vmatprep.subr.bf16.mxu0 %v423
        %487 = vmatpush1.bf16.msra.mxu0 %v422
        %488 = vmatprep.subr.bf16.mxu0 %v425
        %489 = vmatpush1.bf16.msra.mxu0 %v424
        %490 = vmatprep.subr.bf16.mxu0 %v427
        %491 = vmatpush1.bf16.msra.mxu0 %v426
        %492 = vmatprep.subr.bf16.mxu0 %v429
        %493 = vmatpush1.bf16.msra.mxu0 %v428
        %494 = vmatprep.subr.bf16.mxu0 %v431
        %495 = vmatpush1.bf16.msra.mxu0 %v430
        %496 = vmatprep.subr.bf16.mxu0 %v433
        %497 = vmatpush1.bf16.msra.mxu0 %v432
        %498 = vmatprep.subr.bf16.mxu0 %v435
        %499 = vmatpush1.bf16.msra.mxu0 %v434
        %500 = vmatprep.subr.bf16.mxu0 %v437
        %501 = vmatpush1.bf16.msra.mxu0 %v436
        %502 = vmatprep.subr.bf16.mxu0 %v439
        %503 = vmatpush1.bf16.msra.mxu0 %v438
        %504 = vmatprep.subr.bf16.mxu0 %v441
        %505 = vmatpush1.bf16.msra.mxu0 %v440
        %506 = vmatprep.subr.bf16.mxu0 %v443
        %507 = vmatpush1.bf16.msra.mxu0 %v442
        %508 = vmatprep.subr.bf16.mxu0 %v445
        %509 = vmatpush1.bf16.msra.mxu0 %v444
        %510 = vmatprep.subr.bf16.mxu0 %v447
        %511 = vmatpush1.bf16.msra.mxu0 %v446
        %512 = vmatprep.subr.bf16.mxu0 %v449
        %513 = vmatpush1.bf16.msra.mxu0 %v448
        %514 = vmatprep.mubr.bf16.mxu0 %v319
        %515 = vmatmul.mubr.bf16.gmra.mrb[0].mxu0 %v318
        %v516 = vpop.f32.mrb[0].mxu0
        %v517 = vadd.f32 %v308, %v516
        %v518 = vpop.f32.mrb[0].mxu0
        %v519 = vadd.f32 %v312, %v518
        %v520 = vpop.f32.mrb[0].mxu0
        %v521 = vpop.f32.mrb[0].mxu0
        %522 = vdwg.mxu0
        %v523 = vmax.f32 %v517, 0.0
        %v524 = vmax.f32 %v519, 0.0
        %v525 = vpack.c.bf16 %v523, %v523
        %v526 = vpack.c.bf16 %v524, %v524
        %v527 = vld [vmem:[#allocation7] sm:$0xff]
        %v528 = vld [vmem:[#allocation7 + $0x8] sm:$0xff]
        %v529 = vld [vmem:[#allocation7 + $0x10] sm:$0xff]
        %v530 = vld [vmem:[#allocation7 + $0x18] sm:$0xff]
        %v531 = vld [vmem:[#allocation7 + $0x20] sm:$0xff]
        %v532 = vld [vmem:[#allocation7 + $0x28] sm:$0xff]
        %v533 = vld [vmem:[#allocation7 + $0x30] sm:$0xff]
        %v534 = vld [vmem:[#allocation7 + $0x38] sm:$0xff]
        %v535 = vld [vmem:[#allocation7 + $0x40] sm:$0xff]
        %v536 = vld [vmem:[#allocation7 + $0x48] sm:$0xff]
        %v537 = vld [vmem:[#allocation7 + $0x50] sm:$0xff]
        %v538 = vld [vmem:[#allocation7 + $0x58] sm:$0xff]
        %v539 = vld [vmem:[#allocation7 + $0x60] sm:$0xff]
        %v540 = vld [vmem:[#allocation7 + $0x68] sm:$0xff]
        %v541 = vld [vmem:[#allocation7 + $0x70] sm:$0xff]
        %v542 = vld [vmem:[#allocation7 + $0x78] sm:$0xff]
        %v543 = vld [vmem:[#allocation7 + $0x80] sm:$0xff]
        %v544 = vld [vmem:[#allocation7 + $0x88] sm:$0xff]
        %v545 = vld [vmem:[#allocation7 + $0x90] sm:$0xff]
        %v546 = vld [vmem:[#allocation7 + $0x98] sm:$0xff]
        %v547 = vld [vmem:[#allocation7 + $0xa0] sm:$0xff]
        %v548 = vld [vmem:[#allocation7 + $0xa8] sm:$0xff]
        %v549 = vld [vmem:[#allocation7 + $0xb0] sm:$0xff]
        %v550 = vld [vmem:[#allocation7 + $0xb8] sm:$0xff]
        %v551 = vld [vmem:[#allocation7 + $0xc0] sm:$0xff]
        %v552 = vld [vmem:[#allocation7 + $0xc8] sm:$0xff]
        %v553 = vld [vmem:[#allocation7 + $0xd0] sm:$0xff]
        %v554 = vld [vmem:[#allocation7 + $0xd8] sm:$0xff]
        %v555 = vld [vmem:[#allocation7 + $0xe0] sm:$0xff]
        %v556 = vld [vmem:[#allocation7 + $0xe8] sm:$0xff]
        %v557 = vld [vmem:[#allocation7 + $0xf0] sm:$0xff]
        %v558 = vld [vmem:[#allocation7 + $0xf8] sm:$0xff]
        %v559 = vld [vmem:[%s4] sm:$0x3]
        %v561 = vlaneseq
        %v562 = vshrl.u32 %v561, 7
        %v563 = vsub.s32 0, %v562
        %v564 = vrot.slane %v559, %v563
        %v565 = vlaneseq
        %v566 = vshrl.u32 %v565, 7
        %v567 = vsub.s32 1, %v566
        %v568 = vrot.slane %v559, %v567
        %v603 = vunpack.c.l.b16 %v527
        %v604 = vunpack.c.h.b16 %v527
        %v605 = vunpack.c.l.b16 %v528
        %v606 = vunpack.c.h.b16 %v528
        %v607 = vunpack.c.l.b16 %v529
        %v608 = vunpack.c.h.b16 %v529
        %v609 = vunpack.c.l.b16 %v530
        %v610 = vunpack.c.h.b16 %v530
        %v611 = vunpack.c.l.b16 %v531
        %v612 = vunpack.c.h.b16 %v531
        %v613 = vunpack.c.l.b16 %v532
        %v614 = vunpack.c.h.b16 %v532
        %v615 = vunpack.c.l.b16 %v533
        %v616 = vunpack.c.h.b16 %v533
        %v617 = vunpack.c.l.b16 %v534
        %v618 = vunpack.c.h.b16 %v534
        %v619 = vunpack.c.l.b16 %v535
        %v620 = vunpack.c.h.b16 %v535
        %v621 = vunpack.c.l.b16 %v536
        %v622 = vunpack.c.h.b16 %v536
        %v623 = vunpack.c.l.b16 %v537
        %v624 = vunpack.c.h.b16 %v537
        %v625 = vunpack.c.l.b16 %v538
        %v626 = vunpack.c.h.b16 %v538
        %v627 = vunpack.c.l.b16 %v539
        %v628 = vunpack.c.h.b16 %v539
        %v629 = vunpack.c.l.b16 %v540
        %v630 = vunpack.c.h.b16 %v540
        %v631 = vunpack.c.l.b16 %v541
        %v632 = vunpack.c.h.b16 %v541
        %v633 = vunpack.c.l.b16 %v542
        %v634 = vunpack.c.h.b16 %v542
        %v635 = vunpack.c.l.b16 %v543
        %v636 = vunpack.c.h.b16 %v543
        %v637 = vunpack.c.l.b16 %v544
        %v638 = vunpack.c.h.b16 %v544
        %v639 = vunpack.c.l.b16 %v545
        %v640 = vunpack.c.h.b16 %v545
        %v641 = vunpack.c.l.b16 %v546
        %v642 = vunpack.c.h.b16 %v546
        %v643 = vunpack.c.l.b16 %v547
        %v644 = vunpack.c.h.b16 %v547
        %v645 = vunpack.c.l.b16 %v548
        %v646 = vunpack.c.h.b16 %v548
        %v647 = vunpack.c.l.b16 %v549
        %v648 = vunpack.c.h.b16 %v549
        %v649 = vunpack.c.l.b16 %v550
        %v650 = vunpack.c.h.b16 %v550
        %v651 = vunpack.c.l.b16 %v551
        %v652 = vunpack.c.h.b16 %v551
        %v653 = vunpack.c.l.b16 %v552
        %v654 = vunpack.c.h.b16 %v552
        %v655 = vunpack.c.l.b16 %v553
        %v656 = vunpack.c.h.b16 %v553
        %v657 = vunpack.c.l.b16 %v554
        %v658 = vunpack.c.h.b16 %v554
        %v659 = vunpack.c.l.b16 %v555
        %v660 = vunpack.c.h.b16 %v555
        %v661 = vunpack.c.l.b16 %v556
        %v662 = vunpack.c.h.b16 %v556
        %v663 = vunpack.c.l.b16 %v557
        %v664 = vunpack.c.h.b16 %v557
        %v665 = vunpack.c.l.b16 %v558
        %v666 = vunpack.c.h.b16 %v558
        %v667 = vpack.c.b16 %v605, %v603
        %v668 = vpack.c.b16 %v606, %v604
        %v669 = vpack.c.b16 %v609, %v607
        %v670 = vpack.c.b16 %v610, %v608
        %v671 = vpack.c.b16 %v613, %v611
        %v672 = vpack.c.b16 %v614, %v612
        %v673 = vpack.c.b16 %v617, %v615
        %v674 = vpack.c.b16 %v618, %v616
        %v675 = vpack.c.b16 %v621, %v619
        %v676 = vpack.c.b16 %v622, %v620
        %v677 = vpack.c.b16 %v625, %v623
        %v678 = vpack.c.b16 %v626, %v624
        %v679 = vpack.c.b16 %v629, %v627
        %v680 = vpack.c.b16 %v630, %v628
        %v681 = vpack.c.b16 %v633, %v631
        %v682 = vpack.c.b16 %v634, %v632
        %v683 = vpack.c.b16 %v637, %v635
        %v684 = vpack.c.b16 %v638, %v636
        %v685 = vpack.c.b16 %v641, %v639
        %v686 = vpack.c.b16 %v642, %v640
        %v687 = vpack.c.b16 %v645, %v643
        %v688 = vpack.c.b16 %v646, %v644
        %v689 = vpack.c.b16 %v649, %v647
        %v690 = vpack.c.b16 %v650, %v648
        %v691 = vpack.c.b16 %v653, %v651
        %v692 = vpack.c.b16 %v654, %v652
        %v693 = vpack.c.b16 %v657, %v655
        %v694 = vpack.c.b16 %v658, %v656
        %v695 = vpack.c.b16 %v661, %v659
        %v696 = vpack.c.b16 %v662, %v660
        %v697 = vpack.c.b16 %v665, %v663
        %v698 = vpack.c.b16 %v666, %v664
        %731 = vmatprep.subr.bf16.mxu0 %v668
        %732 = vmatpush1.bf16.msra.mxu0 %v667
        %733 = vmatprep.subr.bf16.mxu0 %v670
        %734 = vmatpush1.bf16.msra.mxu0 %v669
        %735 = vmatprep.subr.bf16.mxu0 %v672
        %736 = vmatpush1.bf16.msra.mxu0 %v671
        %737 = vmatprep.subr.bf16.mxu0 %v674
        %738 = vmatpush1.bf16.msra.mxu0 %v673
        %739 = vmatprep.subr.bf16.mxu0 %v676
        %740 = vmatpush1.bf16.msra.mxu0 %v675
        %741 = vmatprep.subr.bf16.mxu0 %v678
        %742 = vmatpush1.bf16.msra.mxu0 %v677
        %743 = vmatprep.subr.bf16.mxu0 %v680
        %744 = vmatpush1.bf16.msra.mxu0 %v679
        %745 = vmatprep.subr.bf16.mxu0 %v682
        %746 = vmatpush1.bf16.msra.mxu0 %v681
        %747 = vmatprep.subr.bf16.mxu0 %v684
        %748 = vmatpush1.bf16.msra.mxu0 %v683
        %749 = vmatprep.subr.bf16.mxu0 %v686
        %750 = vmatpush1.bf16.msra.mxu0 %v685
        %751 = vmatprep.subr.bf16.mxu0 %v688
        %752 = vmatpush1.bf16.msra.mxu0 %v687
        %753 = vmatprep.subr.bf16.mxu0 %v690
        %754 = vmatpush1.bf16.msra.mxu0 %v689
        %755 = vmatprep.subr.bf16.mxu0 %v692
        %756 = vmatpush1.bf16.msra.mxu0 %v691
        %757 = vmatprep.subr.bf16.mxu0 %v694
        %758 = vmatpush1.bf16.msra.mxu0 %v693
        %759 = vmatprep.subr.bf16.mxu0 %v696
        %760 = vmatpush1.bf16.msra.mxu0 %v695
        %761 = vmatprep.subr.bf16.mxu0 %v698
        %762 = vmatpush1.bf16.msra.mxu0 %v697
        %763 = vmatprep.mubr.bf16.mxu0 %v526
        %764 = vmatmul.mubr.bf16.gmra.mrb[0].mxu0 %v525
        %v765 = vpop.f32.mrb[0].mxu0
        %v766 = vadd.f32 %v564, %v765
        %v767 = vpop.f32.mrb[0].mxu0
        %v768 = vadd.f32 %v568, %v767
        %v769 = vpop.f32.mrb[0].mxu0
        %v770 = vpop.f32.mrb[0].mxu0
        %771 = vdwg.mxu0
        %772 = vst [vmem:[%s269] sm:$0xff] %v766
        %773 = vst [vmem:[%s269 + $0x8] sm:$0xff] %v768
        %s774 = sand.u32 %s141, 1
        %s775 = scalar_lea.sflag [#allocation4], %s774
        %s776 = sand.u32 %s141, 1
        %s777 = smul.addr %s776, 16
        %s778 = scalar_lea.vmem [#allocation8], %s777
        // Predicated region
        $region53: #{_run_resident.1} parent=39 // pred_check
          %p779 = pneg %p151
        $region54: #{_run_resident.1} parent=39 // pred_check_branch
          %781 = sbr.rel (%p779) target = $region56
        $region55: #{_run_resident.1} parent=39 // pred_region
          %s783 = ssub.s32 256, 256
          %784 = vsyncadd %s775, %s783
          %s785 = smul.addr %s23, 2
          %s786 = smul.addr %s785, 128
          %s787 = scalar_lea.hbm %s5, %s786
          %s789 = sshll.u32 %s778, 4
          %s790 = int_to_ptr.vmem [resolvable:$true] %s789
          %792 = dma.vmem_to_hbm [thread:$0]  %s790, 256, %s787, %s775
        $region56: #{_run_resident.1} parent=39 // pred_fallthru
          _
      $region40: #{_run_resident.1} parent=5 // pred_fallthru
        _
      %p793 = scmp.le.s32.totalorder 2, %s18
      // Predicated region
      $region57: #{_run_resident.1} parent=5 // pred_check
        %p794 = pneg %p793
      $region58: #{_run_resident.1} parent=5 // pred_check_branch
        %796 = sbr.rel (%p794) target = $region60
      $region59: #{_run_resident.1} parent=5 // pred_region
        %s797 = ssub.s32 %s18, 2
        // Predicated region
        $region61: #{_run_resident.1} parent=59 // pred_check
          %p798 = pneg %p157
        $region62: #{_run_resident.1} parent=59 // pred_check_branch
          %800 = sbr.rel (%p798) target = $region64
        $region63: #{_run_resident.1} parent=59 // pred_region
          %s801 = sand.u32 %s142, 1
          %s802 = scalar_lea.sflag [#allocation4], %s801
          %s803 = sand.u32 %s142, 1
          %s804 = smul.addr %s803, 16
          %s805 = scalar_lea.vmem [#allocation8], %s804
          %806 = dma.done %s802, 256
        $region64: #{_run_resident.1} parent=59 // pred_fallthru
          _
      $region60: #{_run_resident.1} parent=5 // pred_fallthru
        _
    $region6: #{_run_resident.1} parent=1 // loop_footer
      %s22 = sadd.s32 1, %s18
    $region7: #{_run_resident.1} parent=1 // loop_footer_branch
      %17 = sbr.rel target = $region3
    $region8: #{_run_resident.1} parent=1 // loop_exit
      _
    %807 = vsyncpa [#allocation3], 1
    %s808 = scalar_lea.sflag [#allocation3], 1
    %809 = vsyncpa %s808, 1
    %810 = vsyncpa [#allocation6], 1
    %811 = vsyncpa [#allocation4], 1
    %s812 = scalar_lea.sflag [#allocation4], 1
    %813 = vsyncpa %s812, 1

</llo_original>
